<compile_context>
chip_gen: v7x
topology: tpu7x:2x2x1
jax: 0.10.0
libtpu: 0.0.40
codegen_flags: <defaults>
</compile_context>

<pallas_src>
import math

import jax
import jax.numpy as jnp
from jax import lax
from jax.experimental import pallas as pl
from jax.experimental.pallas import tpu as pltpu


# Double-buffered working-set budget: fits v7x's 64 MiB per-TC VMEM with headroom.
_VMEM_BUDGET = 48 * 1024 * 1024


def _l2_normalize(v, eps=1e-12):
    # Matches torch.nn.functional.normalize: v / max(||v||_2, eps)
    v32 = v.astype(jnp.float32)
    sq = jnp.sum(v32 * v32, axis=-1, keepdims=True)
    inv = lax.rsqrt(jnp.maximum(sq, eps * eps))
    return v32 * inv


def _make_arcface_kernel(s, block_c):
    s = float(s)

    def kernel(x_ref, wt_ref, label_ref, delta_ref, out_ref):
        j = pl.program_id(0)  # class-tile index (outer / core-sharded axis)

        # cosine = x_n @ w_n^T : weight was pre-transposed to (E, tn) in the
        # wrapper, so this is a plain NN contraction on the MXU with f32
        # accumulation and no per-tile weight transpose materialized.
        cosine = jnp.dot(x_ref[...], wt_ref[...],
                         preferred_element_type=jnp.float32)        # (tm, tn) f32

        tm, tn = cosine.shape
        # One-hot of the label inside this class tile: compare the un-offset
        # lane iota against the tile-local label ((tm,1) subtract, cheap).
        lab_local = label_ref[...] - j * block_c                     # (tm, 1) int32
        col = lax.broadcasted_iota(jnp.int32, (tm, tn), 1)
        onehot = col == lab_local                                    # (tm, tn)

        # delta_ref already holds (phi - cosine_label) * s, computed once per
        # row in the wrapper -> epilogue is select-add + one mul.
        out = cosine * s + jnp.where(onehot, delta_ref[...], 0.0)
        out_ref[...] = out.astype(out_ref.dtype)

    return kernel


def _pick_tile(dim, candidates):
    for t in candidates:
        if t <= dim and dim % t == 0:
            return int(t)
    return int(dim)  # the full (untiled) dimension is always layout-legal


def arcface_forward(x, weight, label, s=30.0, m=0.5, *,
                    block_b=None, block_c=None,
                    operand_dtype=jnp.bfloat16, out_dtype=jnp.float32):
    """ArcFace logits.  x: (B, E) float, weight: (C, E) float, label: (B,) int.

    Returns (B, C) logits in `out_dtype` (f32 default = exact PyTorch
    semantics; bf16 halves the dominant HBM writeback stream for training)."""
    B, E = x.shape
    C, E2 = weight.shape
    assert E == E2

    cos_m, sin_m = math.cos(m), math.sin(m)
    th = math.cos(math.pi - m)
    mm = math.sin(math.pi - m) * m

    # ---- Hoisted out of the kernel (runs once per call in XLA) -------------
    x_n = _l2_normalize(x).astype(operand_dtype)           # (B, E)
    w_n = _l2_normalize(weight).astype(operand_dtype)      # (C, E)
    w_t = w_n.T                                            # (E, C) lane-dense MXU feed

    # Margin math only for the label column: one gather + sqrt per row instead
    # of a masked cross-lane reduce + sqrt per (batch, class) tile in-kernel.
    # Uses the same rounded operands the kernel sees so the delta matches the
    # MXU cosine at the label column.
    x32 = x_n.astype(jnp.float32)
    w_lab = w_n[label].astype(jnp.float32)                 # (B, E)
    cos_lab = jnp.sum(x32 * w_lab, axis=-1, keepdims=True) # (B, 1)
    sin_lab = jnp.sqrt(jnp.clip(1.0 - cos_lab * cos_lab, 0.0, 1.0))
    phi_lab = cos_lab * cos_m - sin_lab * sin_m
    phi_lab = jnp.where(cos_lab > th, phi_lab, cos_lab - mm)
    delta_s = ((phi_lab - cos_lab) * s).astype(jnp.float32)  # (B, 1), s folded in

    label2d = label.reshape(B, 1).astype(jnp.int32)

    # ---- Tile selection -----------------------------------------------------
    isz = jnp.dtype(operand_dtype).itemsize
    osz = jnp.dtype(out_dtype).itemsize
    sublane = 8 * max(1, 4 // isz)      # 8 rows for f32 operands, 16 for bf16

    if block_b is None:
        # Prefer the full batch: the weight matrix is then streamed from HBM
        # exactly once.  Cap the x tile so the output tile still fits the budget.
        cands = [B] + [t for t in (2048, 1024, 512, 256, 128, 64, 32, 16, 8)
                       if t % sublane == 0]
        cands = [t for t in cands if 2 * t * E * isz <= _VMEM_BUDGET // 4] or [sublane]
        block_b = _pick_tile(B, cands)
    tm = block_b

    def _fits(tn):
        per = 2 * (tm * E * isz + E * tn * isz + tm * tn * osz + tm * 8)
        return per <= _VMEM_BUDGET

    if block_c is None:
        cands = [t for t in (2048, 1024, 512, 256, 128) if _fits(t)] or [128]
        block_c = _pick_tile(C, cands)
    tn = block_c
    # TODO(synk): pad B / C (and mask padded class columns) for real-world
    # shapes that are not tile multiples; today the fallback is the full dim.
    assert B % tm == 0 and C % tn == 0, "B/C must be divisible by chosen tiles"

    n_ctiles, n_btiles = C // tn, B // tm

    # Class axis outermost: within one class tile the inner batch loop revisits
    # the same weight block (W fetched once per class tile), and it is the axis
    # split across v7x's two TensorCores, so W is not duplicated per core.
    grid = (n_ctiles, n_btiles)

    per_step = 2 * (tm * E * isz + E * tn * isz + tm * tn * osz + tm * 8)
    vmem_limit = int(min(56 * 1024 * 1024,
                         max(16 * 1024 * 1024, int(1.5 * per_step))))

    cost = pl.CostEstimate(
        flops=2 * B * C * E,
        transcendentals=0,  # sqrt hoisted into the wrapper
        bytes_accessed=int(n_ctiles * B * E * isz      # x, re-read per class tile
                           + C * E * isz               # weight, read once
                           + n_ctiles * B * 8          # label + delta
                           + B * C * osz),             # logits writeback
    )

    kernel = _make_arcface_kernel(s, tn)

    # NOTE: for very large embeddings (E >= ~2048) add a third, innermost
    # "arbitrary" grid axis over E with an f32 VMEM accumulator instead of
    # full-E x / W tiles (keeps big tm/tn viable inside v7x's 64 MiB VMEM).
    return pl.pallas_call(
        kernel,
        out_shape=jax.ShapeDtypeStruct((B, C), out_dtype),
        grid_spec=pltpu.PrefetchScalarGridSpec(
            num_scalar_prefetch=0,
            grid=grid,
            in_specs=[
                pl.BlockSpec((tm, E), lambda j, i: (i, 0)),   # x_n
                pl.BlockSpec((E, tn), lambda j, i: (0, j)),   # w_t (pre-transposed)
                pl.BlockSpec((tm, 1), lambda j, i: (i, 0)),   # label
                pl.BlockSpec((tm, 1), lambda j, i: (i, 0)),   # (phi - cos) * s
            ],
            out_specs=pl.BlockSpec((tm, tn), lambda j, i: (i, j)),
        ),
        compiler_params=pltpu.CompilerParams(
            dimension_semantics=("parallel", "arbitrary"),
            vmem_limit_bytes=vmem_limit,
        ),
        cost_estimate=cost,
    )(x_n, w_t, label2d, delta_s)


def arcface_reference(x, weight, label, s=30.0, m=0.5, matmul_dtype=jnp.float32):
    """Pure-JAX reference mirroring the PyTorch module.  matmul_dtype lets us
    build a precision-matched reference for the bf16-operand kernel path."""
    cos_m, sin_m = math.cos(m), math.sin(m)
    th = math.cos(math.pi - m)
    mm = math.sin(math.pi - m) * m
    x_n = _l2_normalize(x).astype(matmul_dtype)
    w_n = _l2_normalize(weight).astype(matmul_dtype)
    cosine = lax.dot_general(x_n, w_n,
                             dimension_numbers=(((1,), (1,)), ((), ())),
                             preferred_element_type=jnp.float32)
    sine = jnp.sqrt(jnp.clip(1.0 - cosine ** 2, 0.0, 1.0))
    phi = cosine * cos_m - sine * sin_m
    phi = jnp.where(cosine > th, phi, cosine - mm)
    onehot = jax.nn.one_hot(label, weight.shape[0], dtype=jnp.bool_)
    return jnp.where(onehot, phi, cosine) * s


if __name__ == "__main__":
    # Small but tile-friendly shapes: batch=32, embedding=128, classes=512.
    B, E, C = 32, 128, 512
    s_scale, margin = 30.0, 0.5

    key = jax.random.PRNGKey(0)
    kx, kw, kl = jax.random.split(key, 3)

    x = jax.random.normal(kx, (B, E), dtype=jnp.float32)
    # Deterministic xavier_uniform_-style init for the (class_num, embedding) weight.
    bound = math.sqrt(6.0 / (E + C))
    weight = jax.random.uniform(kw, (C, E), dtype=jnp.float32,
                                minval=-bound, maxval=bound)
    label = jax.random.randint(kl, (B,), 0, C, dtype=jnp.int32)

    # 1) Default auto-tiling: tm = B, tn = C -> grid (1, 1), W streamed once.
    out = jax.block_until_ready(
        arcface_forward(x, weight, label, s=s_scale, m=margin))
    assert out.shape == (B, C) and out.dtype == jnp.float32

    # 2) Small tiles on purpose so the (C_tiles, B_tiles) grid is exercised:
    #    grid = (4, 2).
    out_tiled = jax.block_until_ready(
        arcface_forward(x, weight, label, s=s_scale, m=margin,
                        block_b=16, block_c=128))
    assert out_tiled.shape == (B, C)

    ref_matched = arcface_reference(x, weight, label, s=s_scale, m=margin,
                                    matmul_dtype=jnp.bfloat16)
    ref_exact = arcface_reference(x, weight, label, s=s_scale, m=margin,
                                  matmul_dtype=jnp.float32)

    for o in (out, out_tiled):
        # Tight check vs. a reference using the same bf16 matmul operands.
        assert jnp.allclose(o, ref_matched, atol=5e-3, rtol=0.0), \
            "mismatch vs precision-matched (bf16 operand) reference"
        # Loose sanity check vs. exact f32 PyTorch-semantics reference
        # (bf16 operand rounding -> ~0.1 abs on logits scaled by s=30).
        assert jnp.allclose(o, ref_exact, atol=2e-1, rtol=0.0), \
            "mismatch vs exact f32 reference"

    # 3) bf16 logits path (opt-in; recommended for mem-bound training on v6e/v7x).
    out_bf16 = jax.block_until_ready(
        arcface_forward(x, weight, label, s=s_scale, m=margin,
                        out_dtype=jnp.bfloat16))
    assert out_bf16.dtype == jnp.bfloat16
    assert jnp.allclose(out_bf16.astype(jnp.float32), ref_matched,
                        atol=1.5e-1, rtol=0.0), "mismatch on bf16-output path"

    print("KERNEL_OK")
</pallas_src>

<mosaic_0001>
module attributes {stable_mosaic.version = 11 : i64} {
  func.func @kernel(%arg0: i32, %arg1: i32, %arg2: memref<32x128xbf16, #tpu.memory_space<vmem>>, %arg3: memref<128x512xbf16, #tpu.memory_space<vmem>>, %arg4: memref<32x1xi32, #tpu.memory_space<vmem>>, %arg5: memref<32x1xf32, #tpu.memory_space<vmem>>, %arg6: memref<32x512xf32, #tpu.memory_space<vmem>>) attributes {dimension_semantics = [#tpu.dimension_semantics<parallel>, #tpu.dimension_semantics<arbitrary>], iteration_bounds = array<i64: 1, 1>, scalar_prefetch = 0 : i64, scratch_operands = 0 : i64, tpu.core_type = #tpu.core_type<tc>, window_params = [{transform_indices = @transform_0, window_bounds = array<i64: 32, 128>}, {transform_indices = @transform_1, window_bounds = array<i64: 128, 512>}, {transform_indices = @transform_2, window_bounds = array<i64: 32, 1>}, {transform_indices = @transform_3, window_bounds = array<i64: 32, 1>}, {transform_indices = @transform_4, window_bounds = array<i64: 32, 512>}]} {
    %c0 = arith.constant 0 : index
    %c0_0 = arith.constant 0 : index
    %0 = vector.load %arg2[%c0, %c0_0] : memref<32x128xbf16, #tpu.memory_space<vmem>>, vector<32x128xbf16>
    %c0_1 = arith.constant 0 : index
    %c0_2 = arith.constant 0 : index
    %1 = vector.load %arg3[%c0_1, %c0_2] : memref<128x512xbf16, #tpu.memory_space<vmem>>, vector<128x512xbf16>
    %cst = arith.constant dense<0.000000e+00> : vector<32x512xf32>
    %2 = tpu.matmul %0, %1, %cst {dimension_numbers = #tpu.dot_dimension_numbers<[1], [0], [0], [1], [0, 0, 1, 1], [], []>} : vector<32x128xbf16>, vector<128x512xbf16>, vector<32x512xf32> -> vector<32x512xf32>
    %c0_3 = arith.constant 0 : index
    %c0_4 = arith.constant 0 : index
    %3 = vector.load %arg4[%c0_3, %c0_4] : memref<32x1xi32, #tpu.memory_space<vmem>>, vector<32x1xi32>
    %c512_i32 = arith.constant 512 : i32
    %4 = arith.muli %arg0, %c512_i32 : i32
    %5 = vector.broadcast %4 : i32 to vector<32x1xi32>
    %6 = arith.subi %3, %5 : vector<32x1xi32>
    %7 = tpu.iota {dimensions = array<i32: 1>} : vector<32x512xi32>
    %8 = vector.broadcast %6 : vector<32x1xi32> to vector<32x512xi32>
    %9 = arith.cmpi eq, %7, %8 : vector<32x512xi32>
    %cst_5 = arith.constant 3.000000e+01 : f32
    %10 = vector.broadcast %cst_5 : f32 to vector<32x512xf32>
    %11 = arith.mulf %2, %10 : vector<32x512xf32>
    %c0_6 = arith.constant 0 : index
    %c0_7 = arith.constant 0 : index
    %12 = vector.load %arg5[%c0_6, %c0_7] : memref<32x1xf32, #tpu.memory_space<vmem>>, vector<32x1xf32>
    %cst_8 = arith.constant 0.000000e+00 : f32
    %13 = vector.shape_cast %12 : vector<32x1xf32> to vector<32x1xf32>
    %14 = vector.broadcast %13 : vector<32x1xf32> to vector<32x512xf32>
    %15 = vector.broadcast %cst_8 : f32 to vector<32x512xf32>
    %16 = arith.select %9, %14, %15 : vector<32x512xi1>, vector<32x512xf32>
    %17 = arith.addf %11, %16 : vector<32x512xf32>
    %c0_9 = arith.constant 0 : index
    %c0_10 = arith.constant 0 : index
    %18 = vector.load %arg6[%c0_9, %c0_10] : memref<32x512xf32, #tpu.memory_space<vmem>>, vector<32x512xf32>
    tpu.vector_store %arg6[%c0_9, %c0_10], %17 {strides = array<i32>} : memref<32x512xf32, #tpu.memory_space<vmem>>, vector<32x512xf32>,
    return
  }
  func.func @transform_0(%arg0: i32, %arg1: i32) -> (i32, i32) {
    %c0_i32 = arith.constant 0 : i32
    %c0_i32_0 = arith.constant 0 : i32
    return %arg1, %c0_i32 : i32, i32
  }
  func.func @transform_1(%arg0: i32, %arg1: i32) -> (i32, i32) {
    %c0_i32 = arith.constant 0 : i32
    %c0_i32_0 = arith.constant 0 : i32
    return %c0_i32, %arg0 : i32, i32
  }
  func.func @transform_2(%arg0: i32, %arg1: i32) -> (i32, i32) {
    %c0_i32 = arith.constant 0 : i32
    %c0_i32_0 = arith.constant 0 : i32
    return %arg1, %c0_i32 : i32, i32
  }
  func.func @transform_3(%arg0: i32, %arg1: i32) -> (i32, i32) {
    %c0_i32 = arith.constant 0 : i32
    %c0_i32_0 = arith.constant 0 : i32
    return %arg1, %c0_i32 : i32, i32
  }
  func.func @transform_4(%arg0: i32, %arg1: i32) -> (i32, i32) {
    %c0_i32 = arith.constant 0 : i32
    return %arg1, %arg0 : i32, i32
  }
}

</mosaic_0001>

<llo_original>
// kernel: tpu_custom_call.1
$region0: #{tpu_custom_call.1}
  #allocation0 [shape = 'u32[]', space=smem, size = 0x4, offset = 0x4, fixed_abs, tag = 'smem constant byte address 0x4 - core index']
  #allocation1 [shape = 'u32[144,128]{1,0:T(1,128)}', space=vmem, size = 0x12000, scoped, tag = 'internal scratch']
  %s0 = inlined_call_operand.vmem [shape: bf16[32,128], index: 0, kind: input, shape index: {}]
  %s1 = inlined_call_operand.hbm [shape: bf16[128,512], index: 1, kind: input, shape index: {}]
  %s2 = inlined_call_operand.vmem [shape: s32[32,1], index: 2, kind: input, shape index: {}]
  %s3 = inlined_call_operand.vmem [shape: f32[32,1], index: 3, kind: input, shape index: {}]
  %s4 = inlined_call_operand.hbm [shape: f32[32,512], index: 4, kind: output, shape index: {}]
  %s5 = sld [smem:[#allocation0]]
  $region30: #{tpu_custom_call.1} parent=0
    _
  %s7 = ssub.s32 1, %s5
  %s8 = scalar_select 0, %s7, %s5
  $region1: #{tpu_custom_call.1} parent=0
    #allocation2 [shape = 'u8[131072]{0}', space=vmem, size = 0x20000, scoped, tag = 'input window, operand 1, single buffered']
    #allocation3 [shape = 's32[1]{0}', space=sflag, size = 0x4, scoped, tag = 'scoped memory for tpu_custom_call.1']
    #allocation4 [shape = 's32[1]{0}', space=sflag, size = 0x4, scoped, tag = 'scoped memory for tpu_custom_call.1']
    #allocation5 [shape = 'u8[65536]{0}', space=vmem, size = 0x10000, scoped, tag = 'output window, operand 0, single buffered']
    %9 = vsyncpa [#allocation3], 0
    %10 = vsyncpa [#allocation4], 0
    // Predicated region
    $region2: #{tpu_custom_call.1} parent=1 // pred_check
      _
    $region3: #{tpu_custom_call.1} parent=1 // pred_check_branch
      %12 = sbr.rel (0) target = $region5
    $region4: #{tpu_custom_call.1} parent=1 // pred_region
      _
    $region5: #{tpu_custom_call.1} parent=1 // pred_fallthru
      _
    // Predicated region
    $region6: #{tpu_custom_call.1} parent=1 // pred_check
      _
    $region7: #{tpu_custom_call.1} parent=1 // pred_check_branch
      %14 = sbr.rel (0) target = $region9
    $region8: #{tpu_custom_call.1} parent=1 // pred_region
      %s16 = ssub.s32 4096, 4096
      %17 = vsyncadd [#allocation3], %s16
      %s18 = sshll.u32 [#allocation2], 4
      %s19 = int_to_ptr.vmem [resolvable:$true] %s18
      %24 = dma.hbm_to_vmem [thread:$0]  %s1, 4096, %s19, [#allocation3], 256, 256, 16
    $region9: #{tpu_custom_call.1} parent=1 // pred_fallthru
      _
    // Predicated region
    $region10: #{tpu_custom_call.1} parent=1 // pred_check
      _
    $region11: #{tpu_custom_call.1} parent=1 // pred_check_branch
      %26 = sbr.rel (0) target = $region13
    $region12: #{tpu_custom_call.1} parent=1 // pred_region
      _
    $region13: #{tpu_custom_call.1} parent=1 // pred_fallthru
      _
    // Predicated region
    $region14: #{tpu_custom_call.1} parent=1 // pred_check
      _
    $region15: #{tpu_custom_call.1} parent=1 // pred_check_branch
      %28 = sbr.rel (0) target = $region17
    $region16: #{tpu_custom_call.1} parent=1 // pred_region
      _
    $region17: #{tpu_custom_call.1} parent=1 // pred_fallthru
      _
    // Predicated region
    $region18: #{tpu_custom_call.1} parent=1 // pred_check
      _
    $region19: #{tpu_custom_call.1} parent=1 // pred_check_branch
      %30 = sbr.rel (0) target = $region21
    $region20: #{tpu_custom_call.1} parent=1 // pred_region
      %31 = dma.done [#allocation3], 4096
    $region21: #{tpu_custom_call.1} parent=1 // pred_fallthru
      _
    %v33 = vld [vmem:[%s0] sm:$0xf]
    %v34 = vld [vmem:[%s0 + $0x4] sm:$0xf]
    %v35 = vld [vmem:[%s0 + $0x8] sm:$0xf]
    %v36 = vld [vmem:[%s0 + $0xc] sm:$0xf]
    %v37 = vld [vmem:[#allocation2] sm:$0xff]
    %v38 = vld [vmem:[#allocation2 + $0x8] sm:$0xff]
    %v39 = vld [vmem:[#allocation2 + $0x10] sm:$0xff]
    %v40 = vld [vmem:[#allocation2 + $0x18] sm:$0xff]
    %v41 = vld [vmem:[#allocation2 + $0x20] sm:$0xff]
    %v42 = vld [vmem:[#allocation2 + $0x28] sm:$0xff]
    %v43 = vld [vmem:[#allocation2 + $0x30] sm:$0xff]
    %v44 = vld [vmem:[#allocation2 + $0x38] sm:$0xff]
    %v45 = vld [vmem:[#allocation2 + $0x40] sm:$0xff]
    %v46 = vld [vmem:[#allocation2 + $0x48] sm:$0xff]
    %v47 = vld [vmem:[#allocation2 + $0x50] sm:$0xff]
    %v48 = vld [vmem:[#allocation2 + $0x58] sm:$0xff]
    %v49 = vld [vmem:[#allocation2 + $0x60] sm:$0xff]
    %v50 = vld [vmem:[#allocation2 + $0x68] sm:$0xff]
    %v51 = vld [vmem:[#allocation2 + $0x70] sm:$0xff]
    %v52 = vld [vmem:[#allocation2 + $0x78] sm:$0xff]
    %v53 = vld [vmem:[#allocation2 + $0x80] sm:$0xff]
    %v54 = vld [vmem:[#allocation2 + $0x88] sm:$0xff]
    %v55 = vld [vmem:[#allocation2 + $0x90] sm:$0xff]
    %v56 = vld [vmem:[#allocation2 + $0x98] sm:$0xff]
    %v57 = vld [vmem:[#allocation2 + $0xa0] sm:$0xff]
    %v58 = vld [vmem:[#allocation2 + $0xa8] sm:$0xff]
    %v59 = vld [vmem:[#allocation2 + $0xb0] sm:$0xff]
    %v60 = vld [vmem:[#allocation2 + $0xb8] sm:$0xff]
    %v61 = vld [vmem:[#allocation2 + $0xc0] sm:$0xff]
    %v62 = vld [vmem:[#allocation2 + $0xc8] sm:$0xff]
    %v63 = vld [vmem:[#allocation2 + $0xd0] sm:$0xff]
    %v64 = vld [vmem:[#allocation2 + $0xd8] sm:$0xff]
    %v65 = vld [vmem:[#allocation2 + $0xe0] sm:$0xff]
    %v66 = vld [vmem:[#allocation2 + $0xe8] sm:$0xff]
    %v67 = vld [vmem:[#allocation2 + $0xf0] sm:$0xff]
    %v68 = vld [vmem:[#allocation2 + $0xf8] sm:$0xff]
    %v73 = vunpack.c.l.b16 %v33
    %v74 = vunpack.c.l.b16 %v34
    %v75 = vunpack.c.l.b16 %v35
    %v76 = vunpack.c.l.b16 %v36
    %v77 = vpack.c.b16 %v74, %v73
    %v78 = vpack.c.b16 %v76, %v75
    %v113 = vunpack.c.l.b16 %v37
    %v114 = vunpack.c.h.b16 %v37
    %v115 = vunpack.c.l.b16 %v38
    %v116 = vunpack.c.h.b16 %v38
    %v117 = vunpack.c.l.b16 %v39
    %v118 = vunpack.c.h.b16 %v39
    %v119 = vunpack.c.l.b16 %v40
    %v120 = vunpack.c.h.b16 %v40
    %v121 = vunpack.c.l.b16 %v41
    %v122 = vunpack.c.h.b16 %v41
    %v123 = vunpack.c.l.b16 %v42
    %v124 = vunpack.c.h.b16 %v42
    %v125 = vunpack.c.l.b16 %v43
    %v126 = vunpack.c.h.b16 %v43
    %v127 = vunpack.c.l.b16 %v44
    %v128 = vunpack.c.h.b16 %v44
    %v129 = vunpack.c.l.b16 %v45
    %v130 = vunpack.c.h.b16 %v45
    %v131 = vunpack.c.l.b16 %v46
    %v132 = vunpack.c.h.b16 %v46
    %v133 = vunpack.c.l.b16 %v47
    %v134 = vunpack.c.h.b16 %v47
    %v135 = vunpack.c.l.b16 %v48
    %v136 = vunpack.c.h.b16 %v48
    %v137 = vunpack.c.l.b16 %v49
    %v138 = vunpack.c.h.b16 %v49
    %v139 = vunpack.c.l.b16 %v50
    %v140 = vunpack.c.h.b16 %v50
    %v141 = vunpack.c.l.b16 %v51
    %v142 = vunpack.c.h.b16 %v51
    %v143 = vunpack.c.l.b16 %v52
    %v144 = vunpack.c.h.b16 %v52
    %v145 = vunpack.c.l.b16 %v53
    %v146 = vunpack.c.h.b16 %v53
    %v147 = vunpack.c.l.b16 %v54
    %v148 = vunpack.c.h.b16 %v54
    %v149 = vunpack.c.l.b16 %v55
    %v150 = vunpack.c.h.b16 %v55
    %v151 = vunpack.c.l.b16 %v56
    %v152 = vunpack.c.h.b16 %v56
    %v153 = vunpack.c.l.b16 %v57
    %v154 = vunpack.c.h.b16 %v57
    %v155 = vunpack.c.l.b16 %v58
    %v156 = vunpack.c.h.b16 %v58
    %v157 = vunpack.c.l.b16 %v59
    %v158 = vunpack.c.h.b16 %v59
    %v159 = vunpack.c.l.b16 %v60
    %v160 = vunpack.c.h.b16 %v60
    %v161 = vunpack.c.l.b16 %v61
    %v162 = vunpack.c.h.b16 %v61
    %v163 = vunpack.c.l.b16 %v62
    %v164 = vunpack.c.h.b16 %v62
    %v165 = vunpack.c.l.b16 %v63
    %v166 = vunpack.c.h.b16 %v63
    %v167 = vunpack.c.l.b16 %v64
    %v168 = vunpack.c.h.b16 %v64
    %v169 = vunpack.c.l.b16 %v65
    %v170 = vunpack.c.h.b16 %v65
    %v171 = vunpack.c.l.b16 %v66
    %v172 = vunpack.c.h.b16 %v66
    %v173 = vunpack.c.l.b16 %v67
    %v174 = vunpack.c.h.b16 %v67
    %v175 = vunpack.c.l.b16 %v68
    %v176 = vunpack.c.h.b16 %v68
    %v177 = vpack.c.b16 %v117, %v113
    %v178 = vpack.c.b16 %v118, %v114
    %v179 = vpack.c.b16 %v119, %v115
    %v180 = vpack.c.b16 %v120, %v116
    %v181 = vpack.c.b16 %v125, %v121
    %v182 = vpack.c.b16 %v126, %v122
    %v183 = vpack.c.b16 %v127, %v123
    %v184 = vpack.c.b16 %v128, %v124
    %v185 = vpack.c.b16 %v133, %v129
    %v186 = vpack.c.b16 %v134, %v130
    %v187 = vpack.c.b16 %v135, %v131
    %v188 = vpack.c.b16 %v136, %v132
    %v189 = vpack.c.b16 %v141, %v137
    %v190 = vpack.c.b16 %v142, %v138
    %v191 = vpack.c.b16 %v143, %v139
    %v192 = vpack.c.b16 %v144, %v140
    %v193 = vpack.c.b16 %v149, %v145
    %v194 = vpack.c.b16 %v150, %v146
    %v195 = vpack.c.b16 %v151, %v147
    %v196 = vpack.c.b16 %v152, %v148
    %v197 = vpack.c.b16 %v157, %v153
    %v198 = vpack.c.b16 %v158, %v154
    %v199 = vpack.c.b16 %v159, %v155
    %v200 = vpack.c.b16 %v160, %v156
    %v201 = vpack.c.b16 %v165, %v161
    %v202 = vpack.c.b16 %v166, %v162
    %v203 = vpack.c.b16 %v167, %v163
    %v204 = vpack.c.b16 %v168, %v164
    %v205 = vpack.c.b16 %v173, %v169
    %v206 = vpack.c.b16 %v174, %v170
    %v207 = vpack.c.b16 %v175, %v171
    %v208 = vpack.c.b16 %v176, %v172
    %241 = vmatprep.subr.bf16.mxu0 %v178
    %242 = vmatpush1.bf16.msra.mxu0 %v177
    %243 = vmatprep.subr.bf16.mxu0 %v182
    %244 = vmatpush1.bf16.msra.mxu0 %v181
    %245 = vmatprep.subr.bf16.mxu0 %v186
    %246 = vmatpush1.bf16.msra.mxu0 %v185
    %247 = vmatprep.subr.bf16.mxu0 %v190
    %248 = vmatpush1.bf16.msra.mxu0 %v189
    %249 = vmatprep.subr.bf16.mxu0 %v194
    %250 = vmatpush1.bf16.msra.mxu0 %v193
    %251 = vmatprep.subr.bf16.mxu0 %v198
    %252 = vmatpush1.bf16.msra.mxu0 %v197
    %253 = vmatprep.subr.bf16.mxu0 %v202
    %254 = vmatpush1.bf16.msra.mxu0 %v201
    %255 = vmatprep.subr.bf16.mxu0 %v206
    %256 = vmatpush1.bf16.msra.mxu0 %v205
    %257 = vmatprep.subr.bf16.mxu0 0
    %258 = vmatpush1.bf16.msra.mxu0 0
    %259 = vmatprep.subr.bf16.mxu0 0
    %260 = vmatpush1.bf16.msra.mxu0 0
    %261 = vmatprep.subr.bf16.mxu0 0
    %262 = vmatpush1.bf16.msra.mxu0 0
    %263 = vmatprep.subr.bf16.mxu0 0
    %264 = vmatpush1.bf16.msra.mxu0 0
    %265 = vmatprep.subr.bf16.mxu0 0
    %266 = vmatpush1.bf16.msra.mxu0 0
    %267 = vmatprep.subr.bf16.mxu0 0
    %268 = vmatpush1.bf16.msra.mxu0 0
    %269 = vmatprep.subr.bf16.mxu0 0
    %270 = vmatpush1.bf16.msra.mxu0 0
    %271 = vmatprep.subr.bf16.mxu0 0
    %272 = vmatpush1.bf16.msra.mxu0 0
    %273 = vmatprep.mubr.bf16.mxu0 0
    %274 = vmatmul.mubr.bf16.gmra.mrb[0].mxu0 %v77
    %v275 = vpop.f32.mrb[0].mxu0
    %v276 = vadd.f32 0.0, %v275
    %v277 = vpop.f32.mrb[0].mxu0
    %v278 = vadd.f32 0.0, %v277
    %v279 = vpop.f32.mrb[0].mxu0
    %v280 = vadd.f32 0.0, %v279
    %v281 = vpop.f32.mrb[0].mxu0
    %v282 = vadd.f32 0.0, %v281
    %283 = vmatprep.mubr.bf16.mxu0 0
    %284 = vmatmul.mubr.bf16.gmra.mrb[0].mxu0 %v78
    %v285 = vpop.f32.mrb[0].mxu0
    %v286 = vadd.f32 0.0, %v285
    %v287 = vpop.f32.mrb[0].mxu0
    %v288 = vadd.f32 0.0, %v287
    %v289 = vpop.f32.mrb[0].mxu0
    %v290 = vadd.f32 0.0, %v289
    %v291 = vpop.f32.mrb[0].mxu0
    %v292 = vadd.f32 0.0, %v291
    %293 = vdwg.mxu0
    %294 = vmatprep.subr.bf16.mxu0 %v180
    %295 = vmatpush1.bf16.msra.mxu0 %v179
    %296 = vmatprep.subr.bf16.mxu0 %v184
    %297 = vmatpush1.bf16.msra.mxu0 %v183
    %298 = vmatprep.subr.bf16.mxu0 %v188
    %299 = vmatpush1.bf16.msra.mxu0 %v187
    %300 = vmatprep.subr.bf16.mxu0 %v192
    %301 = vmatpush1.bf16.msra.mxu0 %v191
    %302 = vmatprep.subr.bf16.mxu0 %v196
    %303 = vmatpush1.bf16.msra.mxu0 %v195
    %304 = vmatprep.subr.bf16.mxu0 %v200
    %305 = vmatpush1.bf16.msra.mxu0 %v199
    %306 = vmatprep.subr.bf16.mxu0 %v204
    %307 = vmatpush1.bf16.msra.mxu0 %v203
    %308 = vmatprep.subr.bf16.mxu0 %v208
    %309 = vmatpush1.bf16.msra.mxu0 %v207
    %310 = vmatprep.subr.bf16.mxu0 0
    %311 = vmatpush1.bf16.msra.mxu0 0
    %312 = vmatprep.subr.bf16.mxu0 0
    %313 = vmatpush1.bf16.msra.mxu0 0
    %314 = vmatprep.subr.bf16.mxu0 0
    %315 = vmatpush1.bf16.msra.mxu0 0
    %316 = vmatprep.subr.bf16.mxu0 0
    %317 = vmatpush1.bf16.msra.mxu0 0
    %318 = vmatprep.subr.bf16.mxu0 0
    %319 = vmatpush1.bf16.msra.mxu0 0
    %320 = vmatprep.subr.bf16.mxu0 0
    %321 = vmatpush1.bf16.msra.mxu0 0
    %322 = vmatprep.subr.bf16.mxu0 0
    %323 = vmatpush1.bf16.msra.mxu0 0
    %324 = vmatprep.subr.bf16.mxu0 0
    %325 = vmatpush1.bf16.msra.mxu0 0
    %326 = vmatprep.mubr.bf16.mxu0 0
    %327 = vmatmul.mubr.bf16.gmra.mrb[0].mxu0 %v77
    %v328 = vpop.f32.mrb[0].mxu0
    %v329 = vadd.f32 0.0, %v328
    %v330 = vpop.f32.mrb[0].mxu0
    %v331 = vadd.f32 0.0, %v330
    %v332 = vpop.f32.mrb[0].mxu0
    %v333 = vadd.f32 0.0, %v332
    %v334 = vpop.f32.mrb[0].mxu0
    %v335 = vadd.f32 0.0, %v334
    %336 = vmatprep.mubr.bf16.mxu0 0
    %337 = vmatmul.mubr.bf16.gmra.mrb[0].mxu0 %v78
    %v338 = vpop.f32.mrb[0].mxu0
    %v339 = vadd.f32 0.0, %v338
    %v340 = vpop.f32.mrb[0].mxu0
    %v341 = vadd.f32 0.0, %v340
    %v342 = vpop.f32.mrb[0].mxu0
    %v343 = vadd.f32 0.0, %v342
    %v344 = vpop.f32.mrb[0].mxu0
    %v345 = vadd.f32 0.0, %v344
    %346 = vdwg.mxu0
    %v347 = vld [vmem:[%s2] sm:$0xff]
    %v348 = vld [vmem:[%s2 + $0x8] sm:$0xff]
    %v349 = vld [vmem:[%s2 + $0x10] sm:$0xff]
    %v350 = vld [vmem:[%s2 + $0x18] sm:$0xff]
    %s351 = smul.u32 0, 512
    %v352 = vstv %s351
    %v353 = vsub.s32 %v347, %v352
    %v354 = vsub.s32 %v348, %v352
    %v355 = vsub.s32 %v349, %v352
    %v356 = vsub.s32 %v350, %v352
    %v357 = vlaneseq
    %v358 = vand.u32 %v357, 127
    %v359 = vadd.s32 %v358, 128
    %v360 = vadd.s32 %v358, 256
    %v361 = vadd.s32 %v358, 384
    %362 = vset.pattern.permute.xlu0 0
    %363 = vperm.xlu0 %362, %v353
    %v364 = vpop.permute.xlu0 %363
    %365 = vset.pattern.permute.xlu0 0
    %366 = vperm.xlu0 %365, %v354
    %v367 = vpop.permute.xlu0 %366
    %368 = vset.pattern.permute.xlu0 0
    %369 = vperm.xlu0 %368, %v355
    %v370 = vpop.permute.xlu0 %369
    %371 = vset.pattern.permute.xlu0 0
    %372 = vperm.xlu0 %371, %v356
    %v373 = vpop.permute.xlu0 %372
    %vm374 = vcmp.eq.s32.totalorder %v358, %v364
    %vm375 = vcmp.eq.s32.totalorder %v359, %v364
    %vm376 = vcmp.eq.s32.totalorder %v360, %v364
    %vm377 = vcmp.eq.s32.totalorder %v361, %v364
    %vm378 = vcmp.eq.s32.totalorder %v358, %v367
    %vm379 = vcmp.eq.s32.totalorder %v359, %v367
    %vm380 = vcmp.eq.s32.totalorder %v360, %v367
    %vm381 = vcmp.eq.s32.totalorder %v361, %v367
    %vm382 = vcmp.eq.s32.totalorder %v358, %v370
    %vm383 = vcmp.eq.s32.totalorder %v359, %v370
    %vm384 = vcmp.eq.s32.totalorder %v360, %v370
    %vm385 = vcmp.eq.s32.totalorder %v361, %v370
    %vm386 = vcmp.eq.s32.totalorder %v358, %v373
    %vm387 = vcmp.eq.s32.totalorder %v359, %v373
    %vm388 = vcmp.eq.s32.totalorder %v360, %v373
    %vm389 = vcmp.eq.s32.totalorder %v361, %v373
    %v390 = vmul.f32 %v276, 30.0
    %v391 = vmul.f32 %v278, 30.0
    %v392 = vmul.f32 %v329, 30.0
    %v393 = vmul.f32 %v331, 30.0
    %v394 = vmul.f32 %v280, 30.0
    %v395 = vmul.f32 %v282, 30.0
    %v396 = vmul.f32 %v333, 30.0
    %v397 = vmul.f32 %v335, 30.0
    %v398 = vmul.f32 %v286, 30.0
    %v399 = vmul.f32 %v288, 30.0
    %v400 = vmul.f32 %v339, 30.0
    %v401 = vmul.f32 %v341, 30.0
    %v402 = vmul.f32 %v290, 30.0
    %v403 = vmul.f32 %v292, 30.0
    %v404 = vmul.f32 %v343, 30.0
    %v405 = vmul.f32 %v345, 30.0
    %v406 = vld [vmem:[%s3] sm:$0xff]
    %v407 = vld [vmem:[%s3 + $0x8] sm:$0xff]
    %v408 = vld [vmem:[%s3 + $0x10] sm:$0xff]
    %v409 = vld [vmem:[%s3 + $0x18] sm:$0xff]
    %411 = vset.pattern.permute.xlu0 0
    %412 = vperm.xlu0 %411, %v406
    %v413 = vpop.permute.xlu0 %412
    %416 = vset.pattern.permute.xlu0 0
    %417 = vperm.xlu0 %416, %v407
    %v418 = vpop.permute.xlu0 %417
    %421 = vset.pattern.permute.xlu0 0
    %422 = vperm.xlu0 %421, %v408
    %v423 = vpop.permute.xlu0 %422
    %426 = vset.pattern.permute.xlu0 0
    %427 = vperm.xlu0 %426, %v409
    %v428 = vpop.permute.xlu0 %427
    %v430 = vsel %vm374, %v413, 0.0
    %v431 = vsel %vm375, %v413, 0.0
    %v432 = vsel %vm376, %v413, 0.0
    %v433 = vsel %vm377, %v413, 0.0
    %v434 = vsel %vm378, %v418, 0.0
    %v435 = vsel %vm379, %v418, 0.0
    %v436 = vsel %vm380, %v418, 0.0
    %v437 = vsel %vm381, %v418, 0.0
    %v438 = vsel %vm382, %v423, 0.0
    %v439 = vsel %vm383, %v423, 0.0
    %v440 = vsel %vm384, %v423, 0.0
    %v441 = vsel %vm385, %v423, 0.0
    %v442 = vsel %vm386, %v428, 0.0
    %v443 = vsel %vm387, %v428, 0.0
    %v444 = vsel %vm388, %v428, 0.0
    %v445 = vsel %vm389, %v428, 0.0
    %v446 = vadd.f32 %v390, %v430
    %v447 = vadd.f32 %v391, %v431
    %v448 = vadd.f32 %v392, %v432
    %v449 = vadd.f32 %v393, %v433
    %v450 = vadd.f32 %v394, %v434
    %v451 = vadd.f32 %v395, %v435
    %v452 = vadd.f32 %v396, %v436
    %v453 = vadd.f32 %v397, %v437
    %v454 = vadd.f32 %v398, %v438
    %v455 = vadd.f32 %v399, %v439
    %v456 = vadd.f32 %v400, %v440
    %v457 = vadd.f32 %v401, %v441
    %v458 = vadd.f32 %v402, %v442
    %v459 = vadd.f32 %v403, %v443
    %v460 = vadd.f32 %v404, %v444
    %v461 = vadd.f32 %v405, %v445
    %462 = vst [vmem:[#allocation5] sm:$0xff] %v446
    %463 = vst [vmem:[#allocation5 + $0x8] sm:$0xff] %v447
    %464 = vst [vmem:[#allocation5 + $0x10] sm:$0xff] %v448
    %465 = vst [vmem:[#allocation5 + $0x18] sm:$0xff] %v449
    %466 = vst [vmem:[#allocation5 + $0x20] sm:$0xff] %v450
    %467 = vst [vmem:[#allocation5 + $0x28] sm:$0xff] %v451
    %468 = vst [vmem:[#allocation5 + $0x30] sm:$0xff] %v452
    %469 = vst [vmem:[#allocation5 + $0x38] sm:$0xff] %v453
    %470 = vst [vmem:[#allocation5 + $0x40] sm:$0xff] %v454
    %471 = vst [vmem:[#allocation5 + $0x48] sm:$0xff] %v455
    %472 = vst [vmem:[#allocation5 + $0x50] sm:$0xff] %v456
    %473 = vst [vmem:[#allocation5 + $0x58] sm:$0xff] %v457
    %474 = vst [vmem:[#allocation5 + $0x60] sm:$0xff] %v458
    %475 = vst [vmem:[#allocation5 + $0x68] sm:$0xff] %v459
    %476 = vst [vmem:[#allocation5 + $0x70] sm:$0xff] %v460
    %477 = vst [vmem:[#allocation5 + $0x78] sm:$0xff] %v461
    // Predicated region
    $region22: #{tpu_custom_call.1} parent=1 // pred_check
      _
    $region23: #{tpu_custom_call.1} parent=1 // pred_check_branch
      %479 = sbr.rel (0) target = $region25
    $region24: #{tpu_custom_call.1} parent=1 // pred_region
      %s481 = ssub.s32 2048, 2048
      %482 = vsyncadd [#allocation4], %s481
      %s483 = sshll.u32 [#allocation5], 4
      %s484 = int_to_ptr.vmem [resolvable:$true] %s483
      %489 = dma.vmem_to_hbm [thread:$0]  %s484, 2048, %s4, [#allocation4], 512, 512, 32
    $region25: #{tpu_custom_call.1} parent=1 // pred_fallthru
      _
    // Predicated region
    $region26: #{tpu_custom_call.1} parent=1 // pred_check
      _
    $region27: #{tpu_custom_call.1} parent=1 // pred_check_branch
      %491 = sbr.rel (0) target = $region29
    $region28: #{tpu_custom_call.1} parent=1 // pred_region
      %492 = dma.done [#allocation4], 2048
    $region29: #{tpu_custom_call.1} parent=1 // pred_fallthru
      _
    %493 = vsyncpa [#allocation3], 1
    %494 = vsyncpa [#allocation4], 1

</llo_original>
